<compile_context>
chip_gen: v5e
topology: v5e:2x2
jax: 0.10.0
libtpu: 0.0.40
codegen_flags: <defaults>
</compile_context>

<pallas_src>
import jax
import jax.numpy as jnp
from jax.experimental import pallas as pl
from jax.experimental.pallas import tpu as pltpu


# ----------------------------- static geometry -----------------------------
B = 2
CIN, H, W = 1, 4, 8            # spatial chosen so the conv output flattens to 512,
                               # consistent with Linear_layer1 = nn.Linear(512, 256)
COUT, KH, KW, STRIDE, PAD = 64, 7, 7, 2, 3
OH = (H + 2 * PAD - KH) // STRIDE + 1      # 2
OW = (W + 2 * PAD - KW) // STRIDE + 1      # 4
FEAT = COUT * OH * OW                      # 512
D1, D2 = 256, 3
HW = H * W                                 # 32 real pixels = contraction dim
N_PAD = 128                                # pad final output dim (3) to a full lane

_VMEM = pl.BlockSpec(memory_space=pltpu.MemorySpace.VMEM)


# ------------------------------ Pallas kernel -------------------------------

def _fused_kernel(x_ref, w_ref, b_ref, o_ref):
    # x: (B, HW)      f32   raw flattened input pixels
    # w: (HW, N_PAD)  bf16  fully folded conv+Linear1+Linear2 weight (3 real cols + pad)
    # b: (1, N_PAD)   f32   folded bias (b1 @ W2.T + b2, zero-padded)
    # o: (B, N_PAD)   f32   lane-dense output
    # TODO(synk): self.resnet_layer = Sequential(*list(model.children())[1:-1]) wraps an
    # unspecified external backbone; treated as identity here (which is what makes the
    # full affine fold exact).
    x = x_ref[...].astype(jnp.bfloat16)
    o_ref[...] = jnp.dot(x, w_ref[...],
                         preferred_element_type=jnp.float32) + b_ref[...]


def _fused_forward_call(x_flat, w_full, b_full):
    m = x_flat.shape[0]
    return pl.pallas_call(
        _fused_kernel,
        out_shape=jax.ShapeDtypeStruct((m, N_PAD), jnp.float32),
        in_specs=[_VMEM, _VMEM, _VMEM],
        out_specs=_VMEM,
        cost_estimate=pl.CostEstimate(
            flops=2 * m * HW * N_PAD,
            transcendentals=0,
            bytes_accessed=(m * HW * 4) + (HW * N_PAD * 2)
                           + (N_PAD * 4) + (m * N_PAD * 4)),
    )(x_flat, w_full, b_full)


# ------------------------- one-time weight folding ---------------------------

def prepare_params(params):
    """Fold conv + Linear1 + Linear2 into one (HW, N_PAD) matmul weight + bias.

    The (no-bias) conv is probed with one-hot pixel images, giving the exact Toeplitz
    matrix whose columns are already in PyTorch's CHW flatten order; the two Linear
    layers are folded algebraically.  Everything is done in f32 and cast to bf16 once.
    Called once at setup time.
    """
    eye = jnp.eye(HW, dtype=jnp.float32).reshape(HW, CIN, H, W)
    wt = jax.lax.conv_general_dilated(
        eye, params["conv_w"], window_strides=(STRIDE, STRIDE),
        padding=((PAD, PAD), (PAD, PAD)),
        dimension_numbers=("NCHW", "OIHW", "NCHW"),
    ).reshape(HW, FEAT)                                           # (32, 512) f32 Toeplitz
    w_full = wt @ params["lin_w1"].T @ params["lin_w2"].T          # (32, 3)  f32
    b_full = params["lin_b1"] @ params["lin_w2"].T + params["lin_b2"]   # (3,) f32

    w_pad = jnp.pad(w_full, ((0, 0), (0, N_PAD - D2))).astype(jnp.bfloat16)   # (32, 128)
    b_pad = jnp.pad(b_full, (0, N_PAD - D2)).reshape(1, N_PAD).astype(jnp.float32)
    return w_pad, b_pad


# ------------------------------- Forward pass --------------------------------

def resnet_forward(x, prepared):
    """x: (B, 1, H, W) float32, NCHW (PyTorch layout). Returns (B, 3) float32."""
    w_full, b_full = prepared
    b = x.shape[0]
    x_flat = x.reshape(b, HW)                       # single (contiguous) wrapper op
    out = _fused_forward_call(x_flat, w_full, b_full)
    # nn.Dropout(p=0.5): identity in eval mode (deterministic forward).
    return out[:, :D2]


# ---------------------------------- Params -----------------------------------

def init_params(key):
    k1, k2, k3, k4, k5 = jax.random.split(key, 5)
    conv_w = jax.random.normal(k1, (COUT, CIN, KH, KW), jnp.float32) * (1.0 / (CIN * KH * KW)) ** 0.5
    lin_w1 = jax.random.normal(k2, (D1, FEAT), jnp.float32) * (1.0 / FEAT) ** 0.5
    lin_b1 = jax.random.normal(k3, (D1,), jnp.float32) * 0.01
    lin_w2 = jax.random.normal(k4, (D2, D1), jnp.float32) * (1.0 / D1) ** 0.5
    lin_b2 = jax.random.normal(k5, (D2,), jnp.float32) * 0.01
    return {"conv_w": conv_w, "lin_w1": lin_w1, "lin_b1": lin_b1,
            "lin_w2": lin_w2, "lin_b2": lin_b2}


def reference_forward(x, params):
    """Pure-JAX (XLA, f32) reference: conv -> flatten -> Linear1 -> Linear2."""
    conv_out = jax.lax.conv_general_dilated(
        x, params["conv_w"], window_strides=(STRIDE, STRIDE),
        padding=((PAD, PAD), (PAD, PAD)),
        dimension_numbers=("NCHW", "OIHW", "NCHW"),
    )
    flat = conv_out.reshape(x.shape[0], -1)                       # (B, 512) CHW order
    h1 = flat @ params["lin_w1"].T + params["lin_b1"]
    return h1 @ params["lin_w2"].T + params["lin_b2"]


# ----------------------------------- Main -------------------------------------

if __name__ == "__main__":
    key = jax.random.PRNGKey(0)
    pkey, xkey = jax.random.split(key)
    params = init_params(pkey)
    prepared = prepare_params(params)          # one-time affine fold / padding

    x = jax.random.normal(xkey, (B, CIN, H, W), jnp.float32)

    fwd = jax.jit(resnet_forward)
    out = jax.block_until_ready(fwd(x, prepared))
    ref = jax.block_until_ready(reference_forward(x, params))

    assert out.shape == (B, D2), out.shape
    assert jnp.allclose(out, ref, atol=3e-2, rtol=3e-2), (out, ref)

    print("KERNEL_OK")
</pallas_src>

<mosaic_0001>
module attributes {stable_mosaic.version = 11 : i64} {
  func.func @_fused_kernel(%arg0: memref<2x32xf32, #tpu.memory_space<vmem>>, %arg1: memref<32x128xbf16, #tpu.memory_space<vmem>>, %arg2: memref<1x128xf32, #tpu.memory_space<vmem>>, %arg3: memref<2x128xf32, #tpu.memory_space<vmem>>) attributes {dimension_semantics = [], scalar_prefetch = 0 : i64, scratch_operands = 0 : i64, tpu.core_type = #tpu.core_type<tc>} {
    %c0 = arith.constant 0 : index
    %c0_0 = arith.constant 0 : index
    %0 = vector.load %arg0[%c0, %c0_0] : memref<2x32xf32, #tpu.memory_space<vmem>>, vector<2x32xf32>
    %1 = arith.truncf %0 : vector<2x32xf32> to vector<2x32xbf16>
    %c0_1 = arith.constant 0 : index
    %c0_2 = arith.constant 0 : index
    %2 = vector.load %arg1[%c0_1, %c0_2] : memref<32x128xbf16, #tpu.memory_space<vmem>>, vector<32x128xbf16>
    %cst = arith.constant dense<0.000000e+00> : vector<2x128xf32>
    %3 = tpu.matmul %1, %2, %cst {dimension_numbers = #tpu.dot_dimension_numbers<[1], [0], [0], [1], [0, 0, 1, 1], [], []>} : vector<2x32xbf16>, vector<32x128xbf16>, vector<2x128xf32> -> vector<2x128xf32>
    %c0_3 = arith.constant 0 : index
    %c0_4 = arith.constant 0 : index
    %4 = vector.load %arg2[%c0_3, %c0_4] : memref<1x128xf32, #tpu.memory_space<vmem>>, vector<1x128xf32>
    %5 = vector.broadcast %4 : vector<1x128xf32> to vector<2x128xf32>
    %6 = arith.addf %3, %5 : vector<2x128xf32>
    %c0_5 = arith.constant 0 : index
    %c0_6 = arith.constant 0 : index
    %7 = vector.load %arg3[%c0_5, %c0_6] : memref<2x128xf32, #tpu.memory_space<vmem>>, vector<2x128xf32>
    tpu.vector_store %arg3[%c0_5, %c0_6], %6 {strides = array<i32>} : memref<2x128xf32, #tpu.memory_space<vmem>>, vector<2x128xf32>,
    return
  }
}

</mosaic_0001>

<llo_original>
// kernel: resnet_forward.1
$region0: #{resnet_forward.1}
  #allocation0 [shape = 'u32[]', space=smem, size = 0x4, offset = 0x4, fixed_abs, tag = 'smem constant byte address 0x4 - core index']
  #allocation1 [shape = 'u32[72,128]{1,0:T(1,128)}', space=vmem, size = 0x9000, scoped, tag = 'internal scratch']
  %s0 = inlined_call_operand.vmem [shape: f32[2,32], index: 0, kind: input, shape index: {}]
  %s1 = inlined_call_operand.hbm [shape: bf16[32,128], index: 1, kind: input, shape index: {}]
  %s2 = inlined_call_operand.vmem [shape: f32[1,128], index: 2, kind: input, shape index: {}]
  %s3 = inlined_call_operand.hbm [shape: f32[2,128], index: 3, kind: output, shape index: {}]
  %s4 = sld [smem:[#allocation0]]
  $region26: #{resnet_forward.1} parent=0
    _
  %s6 = ssub.s32 1, %s4
  %s7 = scalar_select 0, %s6, %s4
  $region1: #{resnet_forward.1} parent=0
    #allocation2 [shape = 'u8[8192]{0}', space=vmem, size = 0x2000, scoped, tag = 'input window, operand 1, single buffered']
    #allocation3 [shape = 's32[1]{0}', space=sflag, size = 0x4, scoped, tag = 'scoped memory for resnet_forward.1']
    #allocation4 [shape = 's32[1]{0}', space=sflag, size = 0x4, scoped, tag = 'scoped memory for resnet_forward.1']
    #allocation5 [shape = 'u8[1024]{0}', space=vmem, size = 0x400, scoped, tag = 'output window, operand 0, single buffered']
    %8 = vsyncpa [#allocation3], 0
    %9 = vsyncpa [#allocation4], 0
    // Predicated region
    $region2: #{resnet_forward.1} parent=1 // pred_check
      _
    $region3: #{resnet_forward.1} parent=1 // pred_check_branch
      %11 = sbr.rel (0) target = $region5
    $region4: #{resnet_forward.1} parent=1 // pred_region
      _
    $region5: #{resnet_forward.1} parent=1 // pred_fallthru
      _
    // Predicated region
    $region6: #{resnet_forward.1} parent=1 // pred_check
      _
    $region7: #{resnet_forward.1} parent=1 // pred_check_branch
      %13 = sbr.rel (0) target = $region9
    $region8: #{resnet_forward.1} parent=1 // pred_region
      %15 = vsyncadd [#allocation3], 0
      %s16 = sshll.u32 %s1, 4
      %s17 = int_to_ptr.hbm [resolvable:$true] %s16
      %s18 = sshll.u32 [#allocation2], 4
      %s19 = int_to_ptr.vmem [resolvable:$true] %s18
      %24 = dma.hbm_to_vmem [thread:$0]  %s17, 256, %s19, [#allocation3], 64, 64, 4
    $region9: #{resnet_forward.1} parent=1 // pred_fallthru
      _
    // Predicated region
    $region10: #{resnet_forward.1} parent=1 // pred_check
      _
    $region11: #{resnet_forward.1} parent=1 // pred_check_branch
      %26 = sbr.rel (0) target = $region13
    $region12: #{resnet_forward.1} parent=1 // pred_region
      _
    $region13: #{resnet_forward.1} parent=1 // pred_fallthru
      _
    // Predicated region
    $region14: #{resnet_forward.1} parent=1 // pred_check
      _
    $region15: #{resnet_forward.1} parent=1 // pred_check_branch
      %28 = sbr.rel (0) target = $region17
    $region16: #{resnet_forward.1} parent=1 // pred_region
      %30 = dma.done [#allocation3], 256
    $region17: #{resnet_forward.1} parent=1 // pred_fallthru
      _
    %v32 = vld [vmem:[%s0] sm:$0x3]
    %v33 = vpack.c.bf16 %v32, %v32
    %v34 = vld [vmem:[#allocation2] sm:$0xf]
    %v35 = vld [vmem:[#allocation2 + $0x4] sm:$0xf]
    %v36 = vld [vmem:[#allocation2 + $0x8] sm:$0xf]
    %v37 = vld [vmem:[#allocation2 + $0xc] sm:$0xf]
    %v38 = vld [vmem:[%s2] sm:$0x1]
    %v40 = vperm.slane %v38, 0
    %v46 = vunpack.c.l.b16 %v34
    %v47 = vunpack.c.l.b16 %v35
    %v48 = vunpack.c.l.b16 %v36
    %v49 = vunpack.c.l.b16 %v37
    %v50 = vpack.c.b16 %v47, %v46
    %v51 = vpack.c.b16 %v49, %v48
    %vm54 = vcmask 261120
    %v56 = vsel %vm54, %v33, 0
    %58 = vmatpush.bf16.msra.mxu0 0
    %59 = vmatpush.bf16.msra.mxu0 0
    %60 = vmatpush.bf16.msra.mxu0 0
    %61 = vmatpush.bf16.msra.mxu0 0
    %62 = vmatpush.bf16.msra.mxu0 0
    %63 = vmatpush.bf16.msra.mxu0 0
    %64 = vmatpush.bf16.msra.mxu0 %v51
    %65 = vmatpush.bf16.msra.mxu0 %v50
    %66 = vmatmul.bf16.gmra.mxu0 %v56
    %v67 = vpop.f32.mrf.mxu0
    %v68 = vadd.f32 %v40, %v67
    %v69 = vpop.f32.mrf.mxu0
    %70 = vdwg.mxu0
    %71 = vst [vmem:[#allocation5] sm:$0x3] %v68
    // Predicated region
    $region18: #{resnet_forward.1} parent=1 // pred_check
      _
    $region19: #{resnet_forward.1} parent=1 // pred_check_branch
      %73 = sbr.rel (0) target = $region21
    $region20: #{resnet_forward.1} parent=1 // pred_region
      %75 = vsyncadd [#allocation4], 0
      %s77 = sshll.u32 [#allocation5], 4
      %s78 = int_to_ptr.vmem [resolvable:$true] %s77
      %s79 = sshll.u32 %s3, 4
      %s80 = int_to_ptr.hbm [resolvable:$true] %s79
      %82 = dma.vmem_to_hbm [thread:$0]  %s78, 32, %s80, [#allocation4]
    $region21: #{resnet_forward.1} parent=1 // pred_fallthru
      _
    // Predicated region
    $region22: #{resnet_forward.1} parent=1 // pred_check
      _
    $region23: #{resnet_forward.1} parent=1 // pred_check_branch
      %84 = sbr.rel (0) target = $region25
    $region24: #{resnet_forward.1} parent=1 // pred_region
      %86 = dma.done [#allocation4], 32
    $region25: #{resnet_forward.1} parent=1 // pred_fallthru
      _
    %87 = vsyncpa [#allocation3], 1
    %88 = vsyncpa [#allocation4], 1

</llo_original>
